<compile_context>
chip_gen: v7x
topology: tpu7x:2x2x1
jax: 0.10.0
libtpu: 0.0.40
codegen_flags: <defaults>
</compile_context>

<pallas_src>
import functools

import jax
import jax.numpy as jnp
from jax.experimental import pallas as pl
from jax.experimental.pallas import tpu as pltpu


def _round_up(value, multiple):
    return ((value + multiple - 1) // multiple) * multiple


def _pick_batch_tile(n):
    """Rows per grid step.

    - n <= 16: one full-extent block (block == full dim, so no (8,128)
      divisibility constraint and no out-of-bounds rows at all).
    - otherwise: aim for >= 2 grid steps so v7x's second TensorCore gets work
      under dimension_semantics=("parallel",); keep tiles sublane(8)-aligned,
      snap big tiles to multiples of 128 rows (MXU-height friendly on
      v5e/v6e/v7x) and cap at 512 rows so activations stay well inside VMEM.
    """
    if n <= 16:
        return n
    tb = _round_up((n + 1) // 2, 8)
    if tb >= 128:
        tb = _round_up(tb, 128)
    return min(tb, 512)


def _vmem_limit_bytes(x, wts, bs, tb):
    """Explicit scoped-VMEM budget: weights/biases single-buffered
    (Buffered(1)), x/out tiles double-buffered, plus f32 intermediates."""
    w_bytes = sum(int(w.size) * w.dtype.itemsize for w in wts)
    b_bytes = sum(int(b.size) * b.dtype.itemsize for b in bs)
    x_tile = 2 * tb * x.shape[1] * x.dtype.itemsize
    o_tile = 2 * tb * wts[-1].shape[1] * 4
    act = 4 * tb * max(w.shape[1] for w in wts) * 4
    est = w_bytes + b_bytes + x_tile + o_tile + act
    # 2x headroom, never below the 32 MiB default, capped at v7x's 64 MiB
    # physical VMEM so one setting is safe on v5e / v6e / v7x.
    # TODO(synk): if the fused weight set alone approaches ~48 MiB (much bigger
    # nets), store weights in bf16 or split the fused call into layer groups.
    return int(min(max(2 * est, 32 * 1024 * 1024), 64 * 1024 * 1024))


def _fused_mlp_kernel(*refs, n_layers):
    """Fused MLP: x -> [Linear (+ReLU between layers)] * n_layers, one kernel.

    refs layout: (x_ref, w0_ref, b0_ref, w1_ref, b1_ref, ..., o_ref)
      x_ref : [TB, D0]      VMEM (one batch tile, native input dtype)
      wi_ref: [Di, D(i+1)]  VMEM (pre-transposed, TRUE shape, f32 or bf16)
      bi_ref: [1,  D(i+1)]  VMEM (f32)
      o_ref : [TB, DL]      VMEM (f32, true lane width)
    """
    x_ref = refs[0]
    o_ref = refs[-1]
    # In-kernel upcast of the input tile (mirrors feature_mat.float()); keeps
    # the HBM->VMEM DMA at the input's native width.
    y = x_ref[...].astype(jnp.float32)
    for i in range(n_layers):                      # static unroll at trace time
        w = refs[1 + 2 * i][...]
        b = refs[2 + 2 * i][...]
        # Cast LHS to the weight dtype (no-op for f32, bf16 for the MXU-native
        # path); always accumulate in f32; bias-add / ReLU in f32.
        y = jnp.dot(y.astype(w.dtype), w, preferred_element_type=jnp.float32)
        y = y + b.astype(jnp.float32)
        if i != n_layers - 1:                      # ReLU between layers only
            y = jnp.maximum(y, 0.0)
    o_ref[...] = y.astype(o_ref.dtype)


def _forward_impl(x, wts, bs):
    """x: [N, D0] (any real dtype). wts/bs: tuples of true-shape params."""
    n, d_in = x.shape
    n_layers = len(wts)
    d_out = wts[-1].shape[1]

    tb = _pick_batch_tile(n)
    grid = (pl.cdiv(n, tb),)

    # Input tile: last dim is the FULL feature dim (block == full dim, so no
    # 128-divisibility requirement and no runtime zero-padding of x).
    in_specs = [pl.BlockSpec((tb, d_in), lambda i: (i, 0))]
    operands = [x]
    for w, b in zip(wts, bs):
        # Constant block index across the grid + single-buffered: each weight /
        # bias is DMA'd into VMEM exactly once and stays resident (no 2x VMEM).
        in_specs.append(pl.BlockSpec(w.shape, lambda i: (0, 0),
                                     pipeline_mode=pl.Buffered(1)))
        in_specs.append(pl.BlockSpec(b.shape, lambda i: (0, 0),
                                     pipeline_mode=pl.Buffered(1)))
        operands.append(w)
        operands.append(b)

    kernel = functools.partial(_fused_mlp_kernel, n_layers=n_layers)
    return pl.pallas_call(
        kernel,
        out_shape=jax.ShapeDtypeStruct((n, d_out), jnp.float32),
        grid=grid,
        in_specs=in_specs,
        out_specs=pl.BlockSpec((tb, d_out), lambda i: (i, 0)),
        compiler_params=pltpu.CompilerParams(
            dimension_semantics=("parallel",),
            vmem_limit_bytes=_vmem_limit_bytes(x, wts, bs, tb)),
    )(*operands)


# One jitted executable for the whole forward pass: a single dispatch,
# no per-layer launches, no wrapper-side pad / cast / slice HBM passes.
_forward_jit = jax.jit(_forward_impl)


class PallasMLP:
    """JAX/Pallas equivalent of TorchModel(*units_per_layer): a stack of Linear
    layers with ReLU between all but the last, fused into ONE kernel.

    param_dtype=jnp.bfloat16 stores weights in bf16 (MXU-native matmul, half
    the weight DMA / VMEM); biases, accumulation, bias-add and ReLU stay f32.
    """

    def __init__(self, *units_per_layer, param_dtype=jnp.float32, key=None):
        if key is None:
            key = jax.random.PRNGKey(42)
        self.units = units_per_layer
        self.raw_params = []     # (w [out,in] f32, b [out] f32) torch layout
        wts, bs = [], []
        for layer_i in range(len(units_per_layer) - 1):
            units_in = units_per_layer[layer_i]
            units_out = units_per_layer[layer_i + 1]
            key, wk, bk = jax.random.split(key, 3)
            # Deterministic init mimicking torch.nn.Linear default
            # uniform(-1/sqrt(fan_in), 1/sqrt(fan_in)).
            bound = 1.0 / (units_in ** 0.5)
            w = jax.random.uniform(
                wk, (units_out, units_in), jnp.float32, -bound, bound)
            b = jax.random.uniform(
                bk, (units_out,), jnp.float32, -bound, bound)
            self.raw_params.append((w, b))
            # Pre-transpose ONCE at init: [in, out], TRUE (unpadded) shape.
            wts.append(jnp.asarray(w.T, dtype=param_dtype))
            bs.append(b.reshape(1, units_out))           # bias stays f32
        self.wts = tuple(wts)
        self.bs = tuple(bs)

    def __call__(self, feature_mat):
        return _forward_jit(feature_mat, self.wts, self.bs)


def _reference_forward(model, x):
    """Pure-JAX reference using the unmodified [out,in] f32 parameters."""
    y = x.astype(jnp.float32)
    n_layers = len(model.raw_params)
    for i, (w, b) in enumerate(model.raw_params):
        y = y @ w.T + b
        if i != n_layers - 1:
            y = jnp.maximum(y, 0.0)
    return y


if __name__ == "__main__":
    # Small shapes consistent with the module: MLP 32 -> 64 -> 16 -> 8, batch 8.
    units_per_layer = (32, 64, 16, 8)
    batch = 8

    x = jax.random.normal(jax.random.PRNGKey(0),
                          (batch, units_per_layer[0]), jnp.float32)

    model = PallasMLP(*units_per_layer)

    out = jax.block_until_ready(model(x))
    ref = _reference_forward(model, x)
    assert out.shape == (batch, units_per_layer[-1])
    assert out.dtype == jnp.float32
    assert jnp.allclose(out, ref, atol=1e-4, rtol=1e-4)

    # Ragged / non-power-of-two batches exercise the pad-free, slice-free paths
    # (full-extent single block, and a 2-step grid with a partial last tile).
    for odd_batch in (11, 40):
        x_odd = jax.random.normal(jax.random.PRNGKey(odd_batch),
                                  (odd_batch, units_per_layer[0]), jnp.float32)
        out_odd = jax.block_until_ready(model(x_odd))
        ref_odd = _reference_forward(model, x_odd)
        assert out_odd.shape == (odd_batch, units_per_layer[-1])
        assert jnp.allclose(out_odd, ref_odd, atol=1e-4, rtol=1e-4)

    # bf16-weight variant (MXU-native matmul path); checked against the f32
    # reference with a correspondingly relaxed tolerance.
    model_bf16 = PallasMLP(*units_per_layer, param_dtype=jnp.bfloat16)
    out_bf16 = jax.block_until_ready(model_bf16(x))
    ref_bf16 = _reference_forward(model_bf16, x)
    assert jnp.allclose(out_bf16, ref_bf16, atol=5e-2, rtol=5e-2)

    print("KERNEL_OK")
</pallas_src>

<mosaic_0001>
module attributes {stable_mosaic.version = 11 : i64} {
  func.func @_fused_mlp_kernel(%arg0: i32, %arg1: memref<8x32xf32, #tpu.memory_space<vmem>>, %arg2: memref<32x64xf32, #tpu.memory_space<vmem>>, %arg3: memref<1x64xf32, #tpu.memory_space<vmem>>, %arg4: memref<64x16xf32, #tpu.memory_space<vmem>>, %arg5: memref<1x16xf32, #tpu.memory_space<vmem>>, %arg6: memref<16x8xf32, #tpu.memory_space<vmem>>, %arg7: memref<1x8xf32, #tpu.memory_space<vmem>>, %arg8: memref<8x8xf32, #tpu.memory_space<vmem>>) attributes {dimension_semantics = [#tpu.dimension_semantics<parallel>], iteration_bounds = array<i64: 1>, scalar_prefetch = 0 : i64, scratch_operands = 0 : i64, tpu.core_type = #tpu.core_type<tc>, window_params = [{transform_indices = @transform_0, window_bounds = array<i64: 8, 32>}, {pipeline_mode = #tpu.pipeline_mode<synchronous>, transform_indices = @transform_1, window_bounds = array<i64: 32, 64>}, {pipeline_mode = #tpu.pipeline_mode<synchronous>, transform_indices = @transform_2, window_bounds = array<i64: 1, 64>}, {pipeline_mode = #tpu.pipeline_mode<synchronous>, transform_indices = @transform_3, window_bounds = array<i64: 64, 16>}, {pipeline_mode = #tpu.pipeline_mode<synchronous>, transform_indices = @transform_4, window_bounds = array<i64: 1, 16>}, {pipeline_mode = #tpu.pipeline_mode<synchronous>, transform_indices = @transform_5, window_bounds = array<i64: 16, 8>}, {pipeline_mode = #tpu.pipeline_mode<synchronous>, transform_indices = @transform_6, window_bounds = array<i64: 1, 8>}, {transform_indices = @transform_7, window_bounds = array<i64: 8, 8>}]} {
    %c0 = arith.constant 0 : index
    %c0_0 = arith.constant 0 : index
    %0 = vector.load %arg1[%c0, %c0_0] : memref<8x32xf32, #tpu.memory_space<vmem>>, vector<8x32xf32>
    %c0_1 = arith.constant 0 : index
    %c0_2 = arith.constant 0 : index
    %1 = vector.load %arg2[%c0_1, %c0_2] : memref<32x64xf32, #tpu.memory_space<vmem>>, vector<32x64xf32>
    %c0_3 = arith.constant 0 : index
    %c0_4 = arith.constant 0 : index
    %2 = vector.load %arg3[%c0_3, %c0_4] : memref<1x64xf32, #tpu.memory_space<vmem>>, vector<1x64xf32>
    %cst = arith.constant dense<0.000000e+00> : vector<8x64xf32>
    %3 = tpu.matmul %0, %1, %cst {dimension_numbers = #tpu.dot_dimension_numbers<[1], [0], [0], [1], [0, 0, 1, 1], [], []>} : vector<8x32xf32>, vector<32x64xf32>, vector<8x64xf32> -> vector<8x64xf32>
    %4 = vector.broadcast %2 : vector<1x64xf32> to vector<8x64xf32>
    %5 = arith.addf %3, %4 : vector<8x64xf32>
    %cst_5 = arith.constant 0.000000e+00 : f32
    %6 = vector.broadcast %cst_5 : f32 to vector<8x64xf32>
    %7 = arith.maximumf %5, %6 : vector<8x64xf32>
    %c0_6 = arith.constant 0 : index
    %c0_7 = arith.constant 0 : index
    %8 = vector.load %arg4[%c0_6, %c0_7] : memref<64x16xf32, #tpu.memory_space<vmem>>, vector<64x16xf32>
    %c0_8 = arith.constant 0 : index
    %c0_9 = arith.constant 0 : index
    %9 = vector.load %arg5[%c0_8, %c0_9] : memref<1x16xf32, #tpu.memory_space<vmem>>, vector<1x16xf32>
    %cst_10 = arith.constant dense<0.000000e+00> : vector<8x16xf32>
    %10 = tpu.matmul %7, %8, %cst_10 {dimension_numbers = #tpu.dot_dimension_numbers<[1], [0], [0], [1], [0, 0, 1, 1], [], []>} : vector<8x64xf32>, vector<64x16xf32>, vector<8x16xf32> -> vector<8x16xf32>
    %11 = vector.broadcast %9 : vector<1x16xf32> to vector<8x16xf32>
    %12 = arith.addf %10, %11 : vector<8x16xf32>
    %cst_11 = arith.constant 0.000000e+00 : f32
    %13 = vector.broadcast %cst_11 : f32 to vector<8x16xf32>
    %14 = arith.maximumf %12, %13 : vector<8x16xf32>
    %c0_12 = arith.constant 0 : index
    %c0_13 = arith.constant 0 : index
    %15 = vector.load %arg6[%c0_12, %c0_13] : memref<16x8xf32, #tpu.memory_space<vmem>>, vector<16x8xf32>
    %c0_14 = arith.constant 0 : index
    %c0_15 = arith.constant 0 : index
    %16 = vector.load %arg7[%c0_14, %c0_15] : memref<1x8xf32, #tpu.memory_space<vmem>>, vector<1x8xf32>
    %cst_16 = arith.constant dense<0.000000e+00> : vector<8x8xf32>
    %17 = tpu.matmul %14, %15, %cst_16 {dimension_numbers = #tpu.dot_dimension_numbers<[1], [0], [0], [1], [0, 0, 1, 1], [], []>} : vector<8x16xf32>, vector<16x8xf32>, vector<8x8xf32> -> vector<8x8xf32>
    %18 = vector.broadcast %16 : vector<1x8xf32> to vector<8x8xf32>
    %19 = arith.addf %17, %18 : vector<8x8xf32>
    %c0_17 = arith.constant 0 : index
    %c0_18 = arith.constant 0 : index
    %20 = vector.load %arg8[%c0_17, %c0_18] : memref<8x8xf32, #tpu.memory_space<vmem>>, vector<8x8xf32>
    tpu.vector_store %arg8[%c0_17, %c0_18], %19 {strides = array<i32>} : memref<8x8xf32, #tpu.memory_space<vmem>>, vector<8x8xf32>,
    return
  }
  func.func @transform_0(%arg0: i32) -> (i32, i32) {
    %c0_i32 = arith.constant 0 : i32
    %c0_i32_0 = arith.constant 0 : i32
    return %arg0, %c0_i32 : i32, i32
  }
  func.func @transform_1(%arg0: i32) -> (i32, i32) {
    %c0_i32 = arith.constant 0 : i32
    %c0_i32_0 = arith.constant 0 : i32
    %c0_i32_1 = arith.constant 0 : i32
    return %c0_i32, %c0_i32_0 : i32, i32
  }
  func.func @transform_2(%arg0: i32) -> (i32, i32) {
    %c0_i32 = arith.constant 0 : i32
    %c0_i32_0 = arith.constant 0 : i32
    %c0_i32_1 = arith.constant 0 : i32
    return %c0_i32, %c0_i32_0 : i32, i32
  }
  func.func @transform_3(%arg0: i32) -> (i32, i32) {
    %c0_i32 = arith.constant 0 : i32
    %c0_i32_0 = arith.constant 0 : i32
    %c0_i32_1 = arith.constant 0 : i32
    return %c0_i32, %c0_i32_0 : i32, i32
  }
  func.func @transform_4(%arg0: i32) -> (i32, i32) {
    %c0_i32 = arith.constant 0 : i32
    %c0_i32_0 = arith.constant 0 : i32
    %c0_i32_1 = arith.constant 0 : i32
    return %c0_i32, %c0_i32_0 : i32, i32
  }
  func.func @transform_5(%arg0: i32) -> (i32, i32) {
    %c0_i32 = arith.constant 0 : i32
    %c0_i32_0 = arith.constant 0 : i32
    %c0_i32_1 = arith.constant 0 : i32
    return %c0_i32, %c0_i32_0 : i32, i32
  }
  func.func @transform_6(%arg0: i32) -> (i32, i32) {
    %c0_i32 = arith.constant 0 : i32
    %c0_i32_0 = arith.constant 0 : i32
    %c0_i32_1 = arith.constant 0 : i32
    return %c0_i32, %c0_i32_0 : i32, i32
  }
  func.func @transform_7(%arg0: i32) -> (i32, i32) {
    %c0_i32 = arith.constant 0 : i32
    %c0_i32_0 = arith.constant 0 : i32
    return %arg0, %c0_i32 : i32, i32
  }
}

</mosaic_0001>

<llo_original>
// kernel: _forward_impl.1
$region0: #{_forward_impl.1}
  #allocation0 [shape = 'u32[]', space=smem, size = 0x4, offset = 0x4, fixed_abs, tag = 'smem constant byte address 0x4 - core index']
  #allocation1 [shape = 'u32[144,128]{1,0:T(1,128)}', space=vmem, size = 0x12000, scoped, tag = 'internal scratch']
  %s0 = inlined_call_operand.vmem [shape: f32[8,32], index: 0, kind: input, shape index: {}]
  %s1 = inlined_call_operand.vmem [shape: f32[32,64], index: 1, kind: input, shape index: {}]
  %s2 = inlined_call_operand.vmem [shape: f32[1,64], index: 2, kind: input, shape index: {}]
  %s3 = inlined_call_operand.vmem [shape: f32[64,16], index: 3, kind: input, shape index: {}]
  %s4 = inlined_call_operand.vmem [shape: f32[1,16], index: 4, kind: input, shape index: {}]
  %s5 = inlined_call_operand.vmem [shape: f32[16,8], index: 5, kind: input, shape index: {}]
  %s6 = inlined_call_operand.vmem [shape: f32[1,8], index: 6, kind: input, shape index: {}]
  %s7 = inlined_call_operand.hbm [shape: f32[8,8], index: 7, kind: output, shape index: {}]
  %s8 = sld [smem:[#allocation0]]
  $region38: #{_forward_impl.1} parent=0
    _
  %s10 = ssub.s32 1, %s8
  %s11 = scalar_select 0, %s10, %s8
  $region1: #{_forward_impl.1} parent=0
    #allocation2 [shape = 'u8[4096]{0}', space=vmem, size = 0x1000, scoped, tag = 'output window, operand 0, single buffered']
    #allocation3 [shape = 's32[1]{0}', space=sflag, size = 0x4, scoped, tag = 'scoped memory for _forward_impl.1']
    %12 = vsyncpa [#allocation3], 0
    // Predicated region
    $region2: #{_forward_impl.1} parent=1 // pred_check
      _
    $region3: #{_forward_impl.1} parent=1 // pred_check_branch
      %14 = sbr.rel (0) target = $region5
    $region4: #{_forward_impl.1} parent=1 // pred_region
      _
    $region5: #{_forward_impl.1} parent=1 // pred_fallthru
      _
    // Predicated region
    $region6: #{_forward_impl.1} parent=1 // pred_check
      _
    $region7: #{_forward_impl.1} parent=1 // pred_check_branch
      %16 = sbr.rel (0) target = $region9
    $region8: #{_forward_impl.1} parent=1 // pred_region
      _
    $region9: #{_forward_impl.1} parent=1 // pred_fallthru
      _
    // Predicated region
    $region10: #{_forward_impl.1} parent=1 // pred_check
      _
    $region11: #{_forward_impl.1} parent=1 // pred_check_branch
      %18 = sbr.rel (0) target = $region13
    $region12: #{_forward_impl.1} parent=1 // pred_region
      _
    $region13: #{_forward_impl.1} parent=1 // pred_fallthru
      _
    // Predicated region
    $region14: #{_forward_impl.1} parent=1 // pred_check
      _
    $region15: #{_forward_impl.1} parent=1 // pred_check_branch
      %20 = sbr.rel (0) target = $region17
    $region16: #{_forward_impl.1} parent=1 // pred_region
      _
    $region17: #{_forward_impl.1} parent=1 // pred_fallthru
      _
    // Predicated region
    $region18: #{_forward_impl.1} parent=1 // pred_check
      _
    $region19: #{_forward_impl.1} parent=1 // pred_check_branch
      %22 = sbr.rel (0) target = $region21
    $region20: #{_forward_impl.1} parent=1 // pred_region
      _
    $region21: #{_forward_impl.1} parent=1 // pred_fallthru
      _
    // Predicated region
    $region22: #{_forward_impl.1} parent=1 // pred_check
      _
    $region23: #{_forward_impl.1} parent=1 // pred_check_branch
      %24 = sbr.rel (0) target = $region25
    $region24: #{_forward_impl.1} parent=1 // pred_region
      _
    $region25: #{_forward_impl.1} parent=1 // pred_fallthru
      _
    // Predicated region
    $region26: #{_forward_impl.1} parent=1 // pred_check
      _
    $region27: #{_forward_impl.1} parent=1 // pred_check_branch
      %26 = sbr.rel (0) target = $region29
    $region28: #{_forward_impl.1} parent=1 // pred_region
      _
    $region29: #{_forward_impl.1} parent=1 // pred_fallthru
      _
    %v27 = vld [vmem:[%s0] sm:$0xff]
    %v28 = vld [vmem:[%s1] sm:$0xff]
    %v29 = vld [vmem:[%s1 + $0x8] sm:$0xff]
    %v30 = vld [vmem:[%s1 + $0x10] sm:$0xff]
    %v31 = vld [vmem:[%s1 + $0x18] sm:$0xff]
    %v32 = vld [vmem:[%s2] sm:$0x1]
    %v34 = vlaneseq
    %v35 = vshrl.u32 %v34, 7
    %v36 = vsub.s32 0, %v35
    %v37 = vrot.slane %v32, %v36
    %vm39 = vcmask 261120
    %v41 = vsel %vm39, %v27, 0
    %43 = vmatprep.subr.mxu0 0.0
    %44 = vmatpush1.msra.mxu0 %v28
    %45 = vmatprep.subr.mxu0 0.0
    %46 = vmatpush1.msra.mxu0 %v29
    %47 = vmatprep.subr.mxu0 0.0
    %48 = vmatpush1.msra.mxu0 %v30
    %49 = vmatprep.subr.mxu0 0.0
    %50 = vmatpush1.msra.mxu0 %v31
    %51 = vmatprep.subr.mxu0 0.0
    %52 = vmatpush1.msra.mxu0 0.0
    %53 = vmatprep.subr.mxu0 0.0
    %54 = vmatpush1.msra.mxu0 0.0
    %55 = vmatprep.subr.mxu0 0.0
    %56 = vmatpush1.msra.mxu0 0.0
    %57 = vmatprep.subr.mxu0 0.0
    %58 = vmatpush1.msra.mxu0 0.0
    %59 = vmatprep.subr.mxu0 0.0
    %60 = vmatpush1.msra.mxu0 0.0
    %61 = vmatprep.subr.mxu0 0.0
    %62 = vmatpush1.msra.mxu0 0.0
    %63 = vmatprep.subr.mxu0 0.0
    %64 = vmatpush1.msra.mxu0 0.0
    %65 = vmatprep.subr.mxu0 0.0
    %66 = vmatpush1.msra.mxu0 0.0
    %67 = vmatprep.subr.mxu0 0.0
    %68 = vmatpush1.msra.mxu0 0.0
    %69 = vmatprep.subr.mxu0 0.0
    %70 = vmatpush1.msra.mxu0 0.0
    %71 = vmatprep.subr.mxu0 0.0
    %72 = vmatpush1.msra.mxu0 0.0
    %73 = vmatprep.subr.mxu0 0.0
    %74 = vmatpush1.msra.mxu0 0.0
    %75 = vmatprep.subr.mxu0 0.0
    %76 = vmatpush1.msra.mxu0 0.0
    %77 = vmatprep.subr.mxu0 0.0
    %78 = vmatpush1.msra.mxu0 0.0
    %79 = vmatprep.subr.mxu0 0.0
    %80 = vmatpush1.msra.mxu0 0.0
    %81 = vmatprep.subr.mxu0 0.0
    %82 = vmatpush1.msra.mxu0 0.0
    %83 = vmatprep.subr.mxu0 0.0
    %84 = vmatpush1.msra.mxu0 0.0
    %85 = vmatprep.subr.mxu0 0.0
    %86 = vmatpush1.msra.mxu0 0.0
    %87 = vmatprep.subr.mxu0 0.0
    %88 = vmatpush1.msra.mxu0 0.0
    %89 = vmatprep.subr.mxu0 0.0
    %90 = vmatpush1.msra.mxu0 0.0
    %91 = vmatprep.subr.mxu0 0.0
    %92 = vmatpush1.msra.mxu0 0.0
    %93 = vmatprep.subr.mxu0 0.0
    %94 = vmatpush1.msra.mxu0 0.0
    %95 = vmatprep.subr.mxu0 0.0
    %96 = vmatpush1.msra.mxu0 0.0
    %97 = vmatprep.subr.mxu0 0.0
    %98 = vmatpush1.msra.mxu0 0.0
    %99 = vmatprep.subr.mxu0 0.0
    %100 = vmatpush1.msra.mxu0 0.0
    %101 = vmatprep.subr.mxu0 0.0
    %102 = vmatpush1.msra.mxu0 0.0
    %103 = vmatprep.subr.mxu0 0.0
    %104 = vmatpush1.msra.mxu0 0.0
    %105 = vmatprep.subr.mxu0 0.0
    %106 = vmatpush1.msra.mxu0 0.0
    %107 = vmatprep.mubr.f32.mxu0 0.0
    %108 = vmatmul.mubr.f32.gmra.mrb[0].mxu0 %v41
    %v109 = vpop.f32.mrb[0].mxu0
    %v110 = vadd.f32 %v37, %v109
    %v111 = vpop.f32.mrb[0].mxu0
    %112 = vdwg.mxu0
    %v113 = vmax.f32 %v110, 0.0
    %v114 = vld [vmem:[%s3] sm:$0xff]
    %v115 = vld [vmem:[%s3 + $0x8] sm:$0xff]
    %v116 = vld [vmem:[%s3 + $0x10] sm:$0xff]
    %v117 = vld [vmem:[%s3 + $0x18] sm:$0xff]
    %v118 = vld [vmem:[%s3 + $0x20] sm:$0xff]
    %v119 = vld [vmem:[%s3 + $0x28] sm:$0xff]
    %v120 = vld [vmem:[%s3 + $0x30] sm:$0xff]
    %v121 = vld [vmem:[%s3 + $0x38] sm:$0xff]
    %v122 = vld [vmem:[%s4] sm:$0x1]
    %v124 = vlaneseq
    %v125 = vshrl.u32 %v124, 7
    %v126 = vsub.s32 0, %v125
    %v127 = vrot.slane %v122, %v126
    %vm129 = vcmask 523264
    %v131 = vsel %vm129, %v113, 0
    %133 = vmatprep.subr.mxu0 0.0
    %134 = vmatpush1.msra.mxu0 %v114
    %135 = vmatprep.subr.mxu0 0.0
    %136 = vmatpush1.msra.mxu0 %v115
    %137 = vmatprep.subr.mxu0 0.0
    %138 = vmatpush1.msra.mxu0 %v116
    %139 = vmatprep.subr.mxu0 0.0
    %140 = vmatpush1.msra.mxu0 %v117
    %141 = vmatprep.subr.mxu0 0.0
    %142 = vmatpush1.msra.mxu0 %v118
    %143 = vmatprep.subr.mxu0 0.0
    %144 = vmatpush1.msra.mxu0 %v119
    %145 = vmatprep.subr.mxu0 0.0
    %146 = vmatpush1.msra.mxu0 %v120
    %147 = vmatprep.subr.mxu0 0.0
    %148 = vmatpush1.msra.mxu0 %v121
    %149 = vmatprep.subr.mxu0 0.0
    %150 = vmatpush1.msra.mxu0 0.0
    %151 = vmatprep.subr.mxu0 0.0
    %152 = vmatpush1.msra.mxu0 0.0
    %153 = vmatprep.subr.mxu0 0.0
    %154 = vmatpush1.msra.mxu0 0.0
    %155 = vmatprep.subr.mxu0 0.0
    %156 = vmatpush1.msra.mxu0 0.0
    %157 = vmatprep.subr.mxu0 0.0
    %158 = vmatpush1.msra.mxu0 0.0
    %159 = vmatprep.subr.mxu0 0.0
    %160 = vmatpush1.msra.mxu0 0.0
    %161 = vmatprep.subr.mxu0 0.0
    %162 = vmatpush1.msra.mxu0 0.0
    %163 = vmatprep.subr.mxu0 0.0
    %164 = vmatpush1.msra.mxu0 0.0
    %165 = vmatprep.subr.mxu0 0.0
    %166 = vmatpush1.msra.mxu0 0.0
    %167 = vmatprep.subr.mxu0 0.0
    %168 = vmatpush1.msra.mxu0 0.0
    %169 = vmatprep.subr.mxu0 0.0
    %170 = vmatpush1.msra.mxu0 0.0
    %171 = vmatprep.subr.mxu0 0.0
    %172 = vmatpush1.msra.mxu0 0.0
    %173 = vmatprep.subr.mxu0 0.0
    %174 = vmatpush1.msra.mxu0 0.0
    %175 = vmatprep.subr.mxu0 0.0
    %176 = vmatpush1.msra.mxu0 0.0
    %177 = vmatprep.subr.mxu0 0.0
    %178 = vmatpush1.msra.mxu0 0.0
    %179 = vmatprep.subr.mxu0 0.0
    %180 = vmatpush1.msra.mxu0 0.0
    %181 = vmatprep.subr.mxu0 0.0
    %182 = vmatpush1.msra.mxu0 0.0
    %183 = vmatprep.subr.mxu0 0.0
    %184 = vmatpush1.msra.mxu0 0.0
    %185 = vmatprep.subr.mxu0 0.0
    %186 = vmatpush1.msra.mxu0 0.0
    %187 = vmatprep.subr.mxu0 0.0
    %188 = vmatpush1.msra.mxu0 0.0
    %189 = vmatprep.subr.mxu0 0.0
    %190 = vmatpush1.msra.mxu0 0.0
    %191 = vmatprep.subr.mxu0 0.0
    %192 = vmatpush1.msra.mxu0 0.0
    %193 = vmatprep.subr.mxu0 0.0
    %194 = vmatpush1.msra.mxu0 0.0
    %195 = vmatprep.subr.mxu0 0.0
    %196 = vmatpush1.msra.mxu0 0.0
    %197 = vmatprep.mubr.f32.mxu0 0.0
    %198 = vmatmul.mubr.f32.gmra.mrb[0].mxu0 %v131
    %v199 = vpop.f32.mrb[0].mxu0
    %v200 = vadd.f32 %v127, %v199
    %v201 = vpop.f32.mrb[0].mxu0
    %202 = vdwg.mxu0
    %v203 = vmax.f32 %v200, 0.0
    %v204 = vld [vmem:[%s5] sm:$0xff]
    %v205 = vld [vmem:[%s5 + $0x8] sm:$0xff]
    %v206 = vld [vmem:[%s6] sm:$0x1]
    %v208 = vlaneseq
    %v209 = vshrl.u32 %v208, 7
    %v210 = vsub.s32 0, %v209
    %v211 = vrot.slane %v206, %v210
    %vm213 = vcmask 130048
    %v215 = vsel %vm213, %v203, 0
    %217 = vmatprep.subr.mxu0 0.0
    %218 = vmatpush1.msra.mxu0 %v204
    %219 = vmatprep.subr.mxu0 0.0
    %220 = vmatpush1.msra.mxu0 %v205
    %221 = vmatprep.subr.mxu0 0.0
    %222 = vmatpush1.msra.mxu0 0.0
    %223 = vmatprep.subr.mxu0 0.0
    %224 = vmatpush1.msra.mxu0 0.0
    %225 = vmatprep.subr.mxu0 0.0
    %226 = vmatpush1.msra.mxu0 0.0
    %227 = vmatprep.subr.mxu0 0.0
    %228 = vmatpush1.msra.mxu0 0.0
    %229 = vmatprep.subr.mxu0 0.0
    %230 = vmatpush1.msra.mxu0 0.0
    %231 = vmatprep.subr.mxu0 0.0
    %232 = vmatpush1.msra.mxu0 0.0
    %233 = vmatprep.subr.mxu0 0.0
    %234 = vmatpush1.msra.mxu0 0.0
    %235 = vmatprep.subr.mxu0 0.0
    %236 = vmatpush1.msra.mxu0 0.0
    %237 = vmatprep.subr.mxu0 0.0
    %238 = vmatpush1.msra.mxu0 0.0
    %239 = vmatprep.subr.mxu0 0.0
    %240 = vmatpush1.msra.mxu0 0.0
    %241 = vmatprep.subr.mxu0 0.0
    %242 = vmatpush1.msra.mxu0 0.0
    %243 = vmatprep.subr.mxu0 0.0
    %244 = vmatpush1.msra.mxu0 0.0
    %245 = vmatprep.subr.mxu0 0.0
    %246 = vmatpush1.msra.mxu0 0.0
    %247 = vmatprep.subr.mxu0 0.0
    %248 = vmatpush1.msra.mxu0 0.0
    %249 = vmatprep.subr.mxu0 0.0
    %250 = vmatpush1.msra.mxu0 0.0
    %251 = vmatprep.subr.mxu0 0.0
    %252 = vmatpush1.msra.mxu0 0.0
    %253 = vmatprep.subr.mxu0 0.0
    %254 = vmatpush1.msra.mxu0 0.0
    %255 = vmatprep.subr.mxu0 0.0
    %256 = vmatpush1.msra.mxu0 0.0
    %257 = vmatprep.subr.mxu0 0.0
    %258 = vmatpush1.msra.mxu0 0.0
    %259 = vmatprep.subr.mxu0 0.0
    %260 = vmatpush1.msra.mxu0 0.0
    %261 = vmatprep.subr.mxu0 0.0
    %262 = vmatpush1.msra.mxu0 0.0
    %263 = vmatprep.subr.mxu0 0.0
    %264 = vmatpush1.msra.mxu0 0.0
    %265 = vmatprep.subr.mxu0 0.0
    %266 = vmatpush1.msra.mxu0 0.0
    %267 = vmatprep.subr.mxu0 0.0
    %268 = vmatpush1.msra.mxu0 0.0
    %269 = vmatprep.subr.mxu0 0.0
    %270 = vmatpush1.msra.mxu0 0.0
    %271 = vmatprep.subr.mxu0 0.0
    %272 = vmatpush1.msra.mxu0 0.0
    %273 = vmatprep.subr.mxu0 0.0
    %274 = vmatpush1.msra.mxu0 0.0
    %275 = vmatprep.subr.mxu0 0.0
    %276 = vmatpush1.msra.mxu0 0.0
    %277 = vmatprep.subr.mxu0 0.0
    %278 = vmatpush1.msra.mxu0 0.0
    %279 = vmatprep.subr.mxu0 0.0
    %280 = vmatpush1.msra.mxu0 0.0
    %281 = vmatprep.mubr.f32.mxu0 0.0
    %282 = vmatmul.mubr.f32.gmra.mrb[0].mxu0 %v215
    %v283 = vpop.f32.mrb[0].mxu0
    %v284 = vadd.f32 %v211, %v283
    %v285 = vpop.f32.mrb[0].mxu0
    %286 = vdwg.mxu0
    %vm287 = vcmask 64512
    %288 = vst.msk [vmem:[#allocation2] sm:$0xff] %vm287, %v284
    // Predicated region
    $region30: #{_forward_impl.1} parent=1 // pred_check
      _
    $region31: #{_forward_impl.1} parent=1 // pred_check_branch
      %290 = sbr.rel (0) target = $region33
    $region32: #{_forward_impl.1} parent=1 // pred_region
      %s292 = ssub.s32 128, 128
      %293 = vsyncadd [#allocation3], %s292
      %s295 = sshll.u32 [#allocation2], 4
      %s296 = int_to_ptr.vmem [resolvable:$true] %s295
      %298 = dma.vmem_to_hbm [thread:$0]  %s296, 128, %s7, [#allocation3]
    $region33: #{_forward_impl.1} parent=1 // pred_fallthru
      _
    // Predicated region
    $region34: #{_forward_impl.1} parent=1 // pred_check
      _
    $region35: #{_forward_impl.1} parent=1 // pred_check_branch
      %300 = sbr.rel (0) target = $region37
    $region36: #{_forward_impl.1} parent=1 // pred_region
      %301 = dma.done [#allocation3], 128
    $region37: #{_forward_impl.1} parent=1 // pred_fallthru
      _
    %302 = vsyncpa [#allocation3], 1

</llo_original>
